<compile_context>
chip_gen: v7x
topology: tpu7x:2x2x1
jax: 0.10.0
libtpu: 0.0.40
codegen_flags: <defaults>
</compile_context>

<pallas_src>
import functools

import jax
import jax.numpy as jnp
from jax.experimental import pallas as pl
from jax.experimental.pallas import tpu as pltpu


def _frame_classifier_kernel(p_ref, wc_ref, bc_ref, pool_ref, wh_ref, bh_ref,
                             out_ref, *, inv_hw):
    # p_ref   : (Bt*HW, Kpad)  bf16  wrapper-side im2col patches (lane-dense K)
    # wc_ref  : (Kpad, Cpad)   bf16  im2col conv weight (K, Cout zero-padded)
    # bc_ref  : (1, Cpad)      f32   conv bias (zero-padded)
    # pool_ref: (Bt, Bt*HW)    bf16  block-diagonal ones (per-frame GAP on MXU)
    # wh_ref  : (Cpad, OUTP)   bf16  fused [type|mode|view|zeros] head weight
    # bh_ref  : (1, OUTP)      f32   fused head bias (zero-padded)
    # out_ref : (1, Bt, OUTP)  f32   lane-dense fused logits for this step

    # Conv2d(3x3, SAME) as a single MXU matmul over the stacked im2col K dim.
    acc = jnp.dot(p_ref[...], wc_ref[...],
                  preferred_element_type=jnp.float32)            # (Bt*HW, Cpad)
    acc = jnp.maximum(acc + bc_ref[...], 0.0)                    # bias + ReLU (f32 VPU)

    # Global average pool: block-diagonal ones matmul gives per-frame sums on
    # the MXU; exact f32 scale by 1/HW afterwards (no bf16 1/HW constant).
    hsum = jnp.dot(pool_ref[...], acc.astype(jnp.bfloat16),
                   preferred_element_type=jnp.float32)           # (Bt, Cpad)
    h = hsum * inv_hw                                            # f32 scale

    # Fused clf_type / clf_mode / clf_view heads (lane-dense 128-wide output).
    logits = jnp.dot(h.astype(jnp.bfloat16), wh_ref[...],
                     preferred_element_type=jnp.float32) + bh_ref[...]
    out_ref[...] = logits.reshape(1, *logits.shape).astype(out_ref.dtype)


def frame_classifier_forward(x_nchw, params):
    """x_nchw: (B, Cin, H, W) float32, like the PyTorch module input."""
    wc, bc, wh, bh = params['wc'], params['bc'], params['wh'], params['bh']
    B, Cin, H, W = x_nchw.shape
    HW = H * W
    h_dim = wc.shape[-1]
    K = 9 * Cin
    Kpad = ((K + 127) // 128) * 128                # lane-dense contraction dim
    Cpad = ((h_dim + 127) // 128) * 128            # lane-dense conv channels
    OUTP = 128                                     # lane-dense fused head output

    # Batching: several frames per grid step, but keep >= 2 grid steps so the
    # two v7x TensorCores both get work (no cost on single-TC v5e/v6e).
    Bt = max(1, B // 2) if B >= 2 else 1
    # Cap Bt so the double-buffered patch block stays well inside VMEM.
    Bt = min(Bt, max(1, (8 * 1024 * 1024) // (HW * Kpad * 2 * 2)))
    nsteps = -(-B // Bt)
    Bpad = nsteps * Bt

    # --- wrapper-side im2col (one-time layout plumbing, kept in bf16 end-to-end)
    x = jnp.transpose(x_nchw, (0, 2, 3, 1)).astype(jnp.bfloat16)   # NHWC
    xp = jnp.pad(x, ((0, Bpad - B), (1, 1), (1, 1), (0, 0)))        # halo + batch pad
    patches = jnp.concatenate(
        [xp[:, kh:kh + H, kw:kw + W, :] for kh in range(3) for kw in range(3)],
        axis=-1)                                                    # (Bpad, H, W, 9*Cin)
    patches = patches.reshape(Bpad * HW, K)
    patches = jnp.pad(patches, ((0, 0), (0, Kpad - K)))             # (Bpad*HW, Kpad)

    # --- one-time weight plumbing: im2col reshape, zero pad, bf16 MXU operands.
    wc2 = wc.reshape(K, h_dim)
    wc2 = jnp.pad(wc2, ((0, Kpad - K), (0, Cpad - h_dim))).astype(jnp.bfloat16)
    bc2 = jnp.pad(bc, ((0, 0), (0, Cpad - h_dim))).astype(jnp.float32)
    wh2 = jnp.pad(wh, ((0, Cpad - h_dim), (0, OUTP - wh.shape[1]))).astype(jnp.bfloat16)
    bh2 = jnp.pad(bh, ((0, 0), (0, OUTP - bh.shape[1]))).astype(jnp.float32)

    # Block-diagonal ones pooling matrix: row b selects frame b's HW rows.
    row = jnp.arange(Bt)[:, None]
    col = jnp.arange(Bt * HW)[None, :]
    pool = (col // HW == row).astype(jnp.bfloat16)                  # (Bt, Bt*HW)

    flops = (2 * Bpad * HW * Kpad * Cpad
             + 2 * nsteps * Bt * (Bt * HW) * Cpad
             + 2 * Bpad * Cpad * OUTP)
    bytes_accessed = (patches.size * 2 + wc2.size * 2 + bc2.size * 4 +
                      pool.size * 2 + wh2.size * 2 + bh2.size * 4 +
                      nsteps * Bt * OUTP * 4)

    kernel = functools.partial(_frame_classifier_kernel, inv_hw=1.0 / HW)

    out = pl.pallas_call(
        kernel,
        out_shape=jax.ShapeDtypeStruct((nsteps, Bt, OUTP), jnp.float32),
        grid_spec=pltpu.PrefetchScalarGridSpec(
            num_scalar_prefetch=0,
            grid=(nsteps,),
            in_specs=[
                pl.BlockSpec((Bt * HW, Kpad), lambda b: (b, 0)),
                pl.BlockSpec((Kpad, Cpad), lambda b: (0, 0)),
                pl.BlockSpec((1, Cpad), lambda b: (0, 0)),
                pl.BlockSpec((Bt, Bt * HW), lambda b: (0, 0)),
                pl.BlockSpec((Cpad, OUTP), lambda b: (0, 0)),
                pl.BlockSpec((1, OUTP), lambda b: (0, 0)),
            ],
            out_specs=pl.BlockSpec((1, Bt, OUTP), lambda b: (b, 0, 0)),
        ),
        compiler_params=pltpu.CompilerParams(
            dimension_semantics=("parallel",),
            vmem_limit_bytes=32 * 1024 * 1024,
        ),
        cost_estimate=pl.CostEstimate(flops=flops, transcendentals=0,
                                      bytes_accessed=bytes_accessed),
    )(patches, wc2, bc2, pool, wh2, bh2)

    logits = out.reshape(Bpad, OUTP)[:B]           # only first 7 columns are real
    return dict(type=logits[:, 0:1], mode=logits[:, 1:4], view=logits[:, 4:7])


def init_params(key, c_in, h_dim):
    k1, k2, k3, k4, k5, k6, k7, k8 = jax.random.split(key, 8)
    # Synthetic encoder stem: Conv2d(c_in, h_dim, 3, padding=1), HWIO layout.
    wc = 0.1 * jax.random.normal(k1, (3, 3, c_in, h_dim), jnp.float32)
    bc = 0.1 * jax.random.normal(k2, (1, h_dim), jnp.float32)
    # Heads: clf_type (h_dim->1), clf_mode (h_dim->3), clf_view (h_dim->3),
    # fused column-wise into a single (h_dim, 7) matrix.
    w_type = 0.1 * jax.random.normal(k3, (h_dim, 1), jnp.float32)
    w_mode = 0.1 * jax.random.normal(k4, (h_dim, 3), jnp.float32)
    w_view = 0.1 * jax.random.normal(k5, (h_dim, 3), jnp.float32)
    b_type = 0.1 * jax.random.normal(k6, (1,), jnp.float32)
    b_mode = 0.1 * jax.random.normal(k7, (3,), jnp.float32)
    b_view = 0.1 * jax.random.normal(k8, (3,), jnp.float32)
    wh = jnp.concatenate([w_type, w_mode, w_view], axis=1)          # (h_dim, 7)
    bh = jnp.concatenate([b_type, b_mode, b_view])[None, :]         # (1, 7)
    return dict(wc=wc, bc=bc, wh=wh, bh=bh)


def reference_forward(x_nchw, params):
    """Pure-JAX f32 reference of the same forward for a correctness check."""
    x = jnp.transpose(x_nchw, (0, 2, 3, 1))
    y = jax.lax.conv_general_dilated(
        x, params['wc'], window_strides=(1, 1), padding='SAME',
        dimension_numbers=('NHWC', 'HWIO', 'NHWC'))
    y = jnp.maximum(y + params['bc'][0], 0.0)
    h = jnp.mean(y, axis=(1, 2))
    logits = h @ params['wh'] + params['bh']
    return dict(type=logits[:, 0:1], mode=logits[:, 1:4], view=logits[:, 4:7])


if __name__ == "__main__":
    B, C_IN, H, W = 2, 4, 16, 16
    H_DIM = 32  # encoder.fc.in_features

    key = jax.random.PRNGKey(0)
    kx, kp = jax.random.split(key)
    x = jax.random.normal(kx, (B, C_IN, H, W), jnp.float32)
    params = init_params(kp, C_IN, H_DIM)

    out = frame_classifier_forward(x, params)
    jax.block_until_ready(out)

    ref = reference_forward(x, params)
    for k in ('type', 'mode', 'view'):
        assert out[k].shape == ref[k].shape, k
        # Kernel feeds bf16 operands to the MXU (f32 accumulate); compare to the
        # f32 reference with a bf16-appropriate tolerance.
        assert jnp.max(jnp.abs(out[k] - ref[k])) < 2e-2, k

    print("KERNEL_OK")
</pallas_src>

<mosaic_0001>
module attributes {stable_mosaic.version = 11 : i64} {
  func.func @_frame_classifier_kernel(%arg0: i32, %arg1: memref<256x128xbf16, #tpu.memory_space<vmem>>, %arg2: memref<128x128xbf16, #tpu.memory_space<vmem>>, %arg3: memref<1x128xf32, #tpu.memory_space<vmem>>, %arg4: memref<1x256xbf16, #tpu.memory_space<vmem>>, %arg5: memref<128x128xbf16, #tpu.memory_space<vmem>>, %arg6: memref<1x128xf32, #tpu.memory_space<vmem>>, %arg7: memref<1x1x128xf32, #tpu.memory_space<vmem>>) attributes {dimension_semantics = [#tpu.dimension_semantics<parallel>], iteration_bounds = array<i64: 2>, scalar_prefetch = 0 : i64, scratch_operands = 0 : i64, tpu.core_type = #tpu.core_type<tc>, window_params = [{transform_indices = @transform_0, window_bounds = array<i64: 256, 128>}, {pipeline_mode = #tpu.pipeline_mode<synchronous>, transform_indices = @transform_1, window_bounds = array<i64: 128, 128>}, {pipeline_mode = #tpu.pipeline_mode<synchronous>, transform_indices = @transform_2, window_bounds = array<i64: 1, 128>}, {pipeline_mode = #tpu.pipeline_mode<synchronous>, transform_indices = @transform_3, window_bounds = array<i64: 1, 256>}, {pipeline_mode = #tpu.pipeline_mode<synchronous>, transform_indices = @transform_4, window_bounds = array<i64: 128, 128>}, {pipeline_mode = #tpu.pipeline_mode<synchronous>, transform_indices = @transform_5, window_bounds = array<i64: 1, 128>}, {transform_indices = @transform_6, window_bounds = array<i64: 1, 1, 128>}]} {
    %c0 = arith.constant 0 : index
    %c0_0 = arith.constant 0 : index
    %0 = vector.load %arg1[%c0, %c0_0] : memref<256x128xbf16, #tpu.memory_space<vmem>>, vector<256x128xbf16>
    %c0_1 = arith.constant 0 : index
    %c0_2 = arith.constant 0 : index
    %1 = vector.load %arg2[%c0_1, %c0_2] : memref<128x128xbf16, #tpu.memory_space<vmem>>, vector<128x128xbf16>
    %cst = arith.constant dense<0.000000e+00> : vector<256x128xf32>
    %2 = tpu.matmul %0, %1, %cst {dimension_numbers = #tpu.dot_dimension_numbers<[1], [0], [0], [1], [0, 0, 1, 1], [], []>} : vector<256x128xbf16>, vector<128x128xbf16>, vector<256x128xf32> -> vector<256x128xf32>
    %c0_3 = arith.constant 0 : index
    %c0_4 = arith.constant 0 : index
    %3 = vector.load %arg3[%c0_3, %c0_4] : memref<1x128xf32, #tpu.memory_space<vmem>>, vector<1x128xf32>
    %4 = vector.broadcast %3 : vector<1x128xf32> to vector<256x128xf32>
    %5 = arith.addf %2, %4 : vector<256x128xf32>
    %cst_5 = arith.constant 0.000000e+00 : f32
    %6 = vector.broadcast %cst_5 : f32 to vector<256x128xf32>
    %7 = arith.maximumf %5, %6 : vector<256x128xf32>
    %c0_6 = arith.constant 0 : index
    %c0_7 = arith.constant 0 : index
    %8 = vector.load %arg4[%c0_6, %c0_7] : memref<1x256xbf16, #tpu.memory_space<vmem>>, vector<1x256xbf16>
    %9 = arith.truncf %7 : vector<256x128xf32> to vector<256x128xbf16>
    %cst_8 = arith.constant dense<0.000000e+00> : vector<1x128xf32>
    %10 = tpu.matmul %8, %9, %cst_8 {dimension_numbers = #tpu.dot_dimension_numbers<[1], [0], [0], [1], [0, 0, 1, 1], [], []>} : vector<1x256xbf16>, vector<256x128xbf16>, vector<1x128xf32> -> vector<1x128xf32>
    %cst_9 = arith.constant 3.906250e-03 : f32
    %11 = vector.broadcast %cst_9 : f32 to vector<1x128xf32>
    %12 = arith.mulf %10, %11 : vector<1x128xf32>
    %13 = arith.truncf %12 : vector<1x128xf32> to vector<1x128xbf16>
    %c0_10 = arith.constant 0 : index
    %c0_11 = arith.constant 0 : index
    %14 = vector.load %arg5[%c0_10, %c0_11] : memref<128x128xbf16, #tpu.memory_space<vmem>>, vector<128x128xbf16>
    %cst_12 = arith.constant dense<0.000000e+00> : vector<1x128xf32>
    %15 = tpu.matmul %13, %14, %cst_12 {dimension_numbers = #tpu.dot_dimension_numbers<[1], [0], [0], [1], [0, 0, 1, 1], [], []>} : vector<1x128xbf16>, vector<128x128xbf16>, vector<1x128xf32> -> vector<1x128xf32>
    %c0_13 = arith.constant 0 : index
    %c0_14 = arith.constant 0 : index
    %16 = vector.load %arg6[%c0_13, %c0_14] : memref<1x128xf32, #tpu.memory_space<vmem>>, vector<1x128xf32>
    %17 = arith.addf %15, %16 : vector<1x128xf32>
    %18 = vector.shape_cast %17 : vector<1x128xf32> to vector<1x1x128xf32>
    %c0_15 = arith.constant 0 : index
    %c0_16 = arith.constant 0 : index
    %c0_17 = arith.constant 0 : index
    %19 = vector.load %arg7[%c0_15, %c0_16, %c0_17] : memref<1x1x128xf32, #tpu.memory_space<vmem>>, vector<1x1x128xf32>
    tpu.vector_store %arg7[%c0_15, %c0_16, %c0_17], %18 {strides = array<i32>} : memref<1x1x128xf32, #tpu.memory_space<vmem>>, vector<1x1x128xf32>,
    return
  }
  func.func @transform_0(%arg0: i32) -> (i32, i32) {
    %c0_i32 = arith.constant 0 : i32
    %c0_i32_0 = arith.constant 0 : i32
    return %arg0, %c0_i32 : i32, i32
  }
  func.func @transform_1(%arg0: i32) -> (i32, i32) {
    %c0_i32 = arith.constant 0 : i32
    %c0_i32_0 = arith.constant 0 : i32
    %c0_i32_1 = arith.constant 0 : i32
    return %c0_i32, %c0_i32_0 : i32, i32
  }
  func.func @transform_2(%arg0: i32) -> (i32, i32) {
    %c0_i32 = arith.constant 0 : i32
    %c0_i32_0 = arith.constant 0 : i32
    %c0_i32_1 = arith.constant 0 : i32
    return %c0_i32, %c0_i32_0 : i32, i32
  }
  func.func @transform_3(%arg0: i32) -> (i32, i32) {
    %c0_i32 = arith.constant 0 : i32
    %c0_i32_0 = arith.constant 0 : i32
    %c0_i32_1 = arith.constant 0 : i32
    return %c0_i32, %c0_i32_0 : i32, i32
  }
  func.func @transform_4(%arg0: i32) -> (i32, i32) {
    %c0_i32 = arith.constant 0 : i32
    %c0_i32_0 = arith.constant 0 : i32
    %c0_i32_1 = arith.constant 0 : i32
    return %c0_i32, %c0_i32_0 : i32, i32
  }
  func.func @transform_5(%arg0: i32) -> (i32, i32) {
    %c0_i32 = arith.constant 0 : i32
    %c0_i32_0 = arith.constant 0 : i32
    %c0_i32_1 = arith.constant 0 : i32
    return %c0_i32, %c0_i32_0 : i32, i32
  }
  func.func @transform_6(%arg0: i32) -> (i32, i32, i32) {
    %c0_i32 = arith.constant 0 : i32
    %c0_i32_0 = arith.constant 0 : i32
    %c0_i32_1 = arith.constant 0 : i32
    return %arg0, %c0_i32, %c0_i32_0 : i32, i32, i32
  }
}

</mosaic_0001>

<llo_original>
// kernel: tpu_custom_call.1
$region0: #{tpu_custom_call.1}
  #allocation0 [shape = 'u32[]', space=smem, size = 0x4, offset = 0x4, fixed_abs, tag = 'smem constant byte address 0x4 - core index']
  #allocation1 [shape = 'u32[144,128]{1,0:T(1,128)}', space=vmem, size = 0x12000, scoped, tag = 'internal scratch']
  %s0 = inlined_call_operand.hbm [shape: bf16[512,128], index: 0, kind: input, shape index: {}]
  %s1 = inlined_call_operand.hbm [shape: bf16[128,128], index: 1, kind: input, shape index: {}]
  %s2 = inlined_call_operand.vmem [shape: f32[1,128], index: 2, kind: input, shape index: {}]
  %s3 = inlined_call_operand.vmem [shape: bf16[1,256], index: 3, kind: input, shape index: {}]
  %s4 = inlined_call_operand.hbm [shape: bf16[128,128], index: 4, kind: input, shape index: {}]
  %s5 = inlined_call_operand.vmem [shape: f32[1,128], index: 5, kind: input, shape index: {}]
  %s6 = inlined_call_operand.hbm [shape: f32[2,1,128], index: 6, kind: output, shape index: {}]
  %s7 = sld [smem:[#allocation0]]
  $region69: #{tpu_custom_call.1} parent=0
    _
  %s9 = ssub.s32 1, %s7
  %s10 = scalar_select 0, %s9, %s7
  $region1: #{tpu_custom_call.1} parent=0
    #allocation2 [shape = 'u8[131072]{0}', space=vmem, size = 0x20000, scoped, tag = 'input window, operand 0']
    #allocation3 [shape = 's32[2]{0}', space=sflag, size = 0x8, scoped, tag = 'scoped memory for tpu_custom_call.1']
    #allocation4 [shape = 's32[2]{0}', space=sflag, size = 0x8, scoped, tag = 'scoped memory for tpu_custom_call.1']
    #allocation5 [shape = 'u8[32768]{0}', space=vmem, size = 0x8000, scoped, tag = 'input window, operand 1, single buffered']
    #allocation6 [shape = 's32[1]{0}', space=sflag, size = 0x4, scoped, tag = 'scoped memory for tpu_custom_call.1']
    #allocation7 [shape = 'u8[32768]{0}', space=vmem, size = 0x8000, scoped, tag = 'input window, operand 4, single buffered']
    #allocation8 [shape = 'u8[1024]{0}', space=vmem, size = 0x400, scoped, tag = 'output window, operand 0']
    %11 = vsyncpa [#allocation3], 0
    %s12 = scalar_lea.sflag [#allocation3], 1
    %13 = vsyncpa %s12, 0
    %14 = vsyncpa [#allocation6], 0
    %15 = vsyncpa [#allocation4], 0
    %s16 = scalar_lea.sflag [#allocation4], 1
    %17 = vsyncpa %s16, 0
    loop: start=0, step=1, limit=4
    $region2: #{tpu_custom_call.1} parent=1 // loop_pre_header
      _
    $region3: #{tpu_custom_call.1} parent=1 // loop_header
      %s19 = sphi 0, %s23
      %p20 = scmp.ge.s32.totalorder %s19, 4
      %s29 = sphi 0, %s31
      %s32 = sphi 0, %s29
      %s33 = sphi 0, %s32
      %s49 = sphi 0, %s33
      %s53 = sphi 0, %s53
      %s55 = sphi 0, %s53
      %s56 = sphi 0, %s55
      %s70 = sphi 0, %s56
      %s74 = sphi 0, %s74
      %s76 = sphi 0, %s74
      %s77 = sphi 0, %s76
      %s91 = sphi 0, %s77
      %s95 = sphi 0, %s95
      %s97 = sphi 0, %s95
      %s98 = sphi 0, %s97
      %s112 = sphi 0, %s98
      %s116 = sphi 0, %s116
      %s118 = sphi 0, %s116
      %s119 = sphi 0, %s118
      %s133 = sphi 0, %s119
      %s137 = sphi 0, %s137
      %s139 = sphi 0, %s137
      %s140 = sphi 0, %s139
      %s154 = sphi 0, %s140
      %s160 = sphi 0, %s162
      %s163 = sphi 0, %s160
      %s164 = sphi 0, %s163
      %s180 = sphi 0, %s164
    $region4: #{tpu_custom_call.1} parent=1 // loop_header_branch
      %22 = sbr.rel (%p20) target = $region8
    $region5: #{tpu_custom_call.1} parent=1 // loop_body
      %s24 = ssub.s32 %s19, 1
      %s25 = ssub.s32 %s19, 2
      %s26 = sadd.s32 %s19, 1
      %s27 = ssub.s32 %s19, %s26
      %p28 = scmp.eq.s32.totalorder %s27, 0
      %s30 = sadd.s32 %s29, 1
      %s31 = scalar_select %p28, %s29, %s30
      %p34 = pneg %p28
      %p35 = scmp.eq.s32.totalorder %s19, 1
      %p36 = por %p34, %p35
      %p37 = scmp.ne.s32.totalorder %s29, %s32
      %p38 = scmp.eq.s32.totalorder %s19, 0
      %p39 = por %p37, %p38
      %p40 = scmp.ne.s32.totalorder %s29, %s32
      %p41 = scmp.eq.s32.totalorder %s24, 1
      %p42 = por %p40, %p41
      %p43 = scmp.ne.s32.totalorder %s32, %s33
      %p44 = scmp.eq.s32.totalorder %s24, 0
      %p45 = por %p43, %p44
      %p46 = scmp.ne.s32.totalorder %s32, %s33
      %p47 = scmp.eq.s32.totalorder %s25, 1
      %p48 = por %p46, %p47
      %p50 = scmp.ne.s32.totalorder %s33, %s49
      %p51 = scmp.eq.s32.totalorder %s25, 0
      %p52 = por %p50, %p51
      %s54 = sadd.s32 %s53, 1
      %p57 = scmp.eq.s32.totalorder %s19, 1
      %p58 = scmp.ne.s32.totalorder %s53, %s55
      %p59 = scmp.eq.s32.totalorder %s19, 0
      %p60 = por %p58, %p59
      %p61 = scmp.ne.s32.totalorder %s53, %s55
      %p62 = scmp.eq.s32.totalorder %s24, 1
      %p63 = por %p61, %p62
      %p64 = scmp.ne.s32.totalorder %s55, %s56
      %p65 = scmp.eq.s32.totalorder %s24, 0
      %p66 = por %p64, %p65
      %p67 = scmp.ne.s32.totalorder %s55, %s56
      %p68 = scmp.eq.s32.totalorder %s25, 1
      %p69 = por %p67, %p68
      %p71 = scmp.ne.s32.totalorder %s56, %s70
      %p72 = scmp.eq.s32.totalorder %s25, 0
      %p73 = por %p71, %p72
      %s75 = sadd.s32 %s74, 1
      %p78 = scmp.eq.s32.totalorder %s19, 1
      %p79 = scmp.ne.s32.totalorder %s74, %s76
      %p80 = scmp.eq.s32.totalorder %s19, 0
      %p81 = por %p79, %p80
      %p82 = scmp.ne.s32.totalorder %s74, %s76
      %p83 = scmp.eq.s32.totalorder %s24, 1
      %p84 = por %p82, %p83
      %p85 = scmp.ne.s32.totalorder %s76, %s77
      %p86 = scmp.eq.s32.totalorder %s24, 0
      %p87 = por %p85, %p86
      %p88 = scmp.ne.s32.totalorder %s76, %s77
      %p89 = scmp.eq.s32.totalorder %s25, 1
      %p90 = por %p88, %p89
      %p92 = scmp.ne.s32.totalorder %s77, %s91
      %p93 = scmp.eq.s32.totalorder %s25, 0
      %p94 = por %p92, %p93
      %s96 = sadd.s32 %s95, 1
      %p99 = scmp.eq.s32.totalorder %s19, 1
      %p100 = scmp.ne.s32.totalorder %s95, %s97
      %p101 = scmp.eq.s32.totalorder %s19, 0
      %p102 = por %p100, %p101
      %p103 = scmp.ne.s32.totalorder %s95, %s97
      %p104 = scmp.eq.s32.totalorder %s24, 1
      %p105 = por %p103, %p104
      %p106 = scmp.ne.s32.totalorder %s97, %s98
      %p107 = scmp.eq.s32.totalorder %s24, 0
      %p108 = por %p106, %p107
      %p109 = scmp.ne.s32.totalorder %s97, %s98
      %p110 = scmp.eq.s32.totalorder %s25, 1
      %p111 = por %p109, %p110
      %p113 = scmp.ne.s32.totalorder %s98, %s112
      %p114 = scmp.eq.s32.totalorder %s25, 0
      %p115 = por %p113, %p114
      %s117 = sadd.s32 %s116, 1
      %p120 = scmp.eq.s32.totalorder %s19, 1
      %p121 = scmp.ne.s32.totalorder %s116, %s118
      %p122 = scmp.eq.s32.totalorder %s19, 0
      %p123 = por %p121, %p122
      %p124 = scmp.ne.s32.totalorder %s116, %s118
      %p125 = scmp.eq.s32.totalorder %s24, 1
      %p126 = por %p124, %p125
      %p127 = scmp.ne.s32.totalorder %s118, %s119
      %p128 = scmp.eq.s32.totalorder %s24, 0
      %p129 = por %p127, %p128
      %p130 = scmp.ne.s32.totalorder %s118, %s119
      %p131 = scmp.eq.s32.totalorder %s25, 1
      %p132 = por %p130, %p131
      %p134 = scmp.ne.s32.totalorder %s119, %s133
      %p135 = scmp.eq.s32.totalorder %s25, 0
      %p136 = por %p134, %p135
      %s138 = sadd.s32 %s137, 1
      %p141 = scmp.eq.s32.totalorder %s19, 1
      %p142 = scmp.ne.s32.totalorder %s137, %s139
      %p143 = scmp.eq.s32.totalorder %s19, 0
      %p144 = por %p142, %p143
      %p145 = scmp.ne.s32.totalorder %s137, %s139
      %p146 = scmp.eq.s32.totalorder %s24, 1
      %p147 = por %p145, %p146
      %p148 = scmp.ne.s32.totalorder %s139, %s140
      %p149 = scmp.eq.s32.totalorder %s24, 0
      %p150 = por %p148, %p149
      %p151 = scmp.ne.s32.totalorder %s139, %s140
      %p152 = scmp.eq.s32.totalorder %s25, 1
      %p153 = por %p151, %p152
      %p155 = scmp.ne.s32.totalorder %s140, %s154
      %p156 = scmp.eq.s32.totalorder %s25, 0
      %p157 = por %p155, %p156
      %s158 = ssub.s32 %s19, %s26
      %p159 = scmp.eq.s32.totalorder %s158, 0
      %s161 = sadd.s32 %s160, 1
      %s162 = scalar_select %p159, %s160, %s161
      %p165 = pneg %p159
      %p166 = scmp.eq.s32.totalorder %s19, 1
      %p167 = por %p165, %p166
      %p168 = scmp.ne.s32.totalorder %s160, %s163
      %p169 = scmp.eq.s32.totalorder %s19, 0
      %p170 = por %p168, %p169
      %p171 = scmp.ne.s32.totalorder %s160, %s163
      %p172 = scmp.eq.s32.totalorder %s24, 1
      %p173 = por %p171, %p172
      %p174 = scmp.ne.s32.totalorder %s163, %s164
      %p175 = scmp.eq.s32.totalorder %s24, 0
      %p176 = por %p174, %p175
      %p177 = scmp.ne.s32.totalorder %s163, %s164
      %p178 = scmp.eq.s32.totalorder %s25, 1
      %p179 = por %p177, %p178
      %p181 = scmp.ne.s32.totalorder %s164, %s180
      %p182 = scmp.eq.s32.totalorder %s25, 0
      %p183 = por %p181, %p182
      %p184 = scmp.le.s32.totalorder 1, %s19
      %p185 = scmp.lt.s32.totalorder %s19, 3
      %p186 = pnand %p184, %p185
      %p187 = pneg %p186
      // Predicated region
      $region9: #{tpu_custom_call.1} parent=5 // pred_check
        _
      $region10: #{tpu_custom_call.1} parent=5 // pred_check_branch
        %189 = sbr.rel (%p186) target = $region12
      $region11: #{tpu_custom_call.1} parent=5 // pred_region
        %s190 = ssub.s32 %s19, 1
        // Predicated region
        $region13: #{tpu_custom_call.1} parent=11 // pred_check
          %p191 = pneg %p66
        $region14: #{tpu_custom_call.1} parent=11 // pred_check_branch
          %193 = sbr.rel (%p191) target = $region16
        $region15: #{tpu_custom_call.1} parent=11 // pred_region
          %s195 = ssub.s32 1024, 1024
          %196 = vsyncadd [#allocation6], %s195
          %s197 = sshll.u32 [#allocation5], 4
          %s198 = int_to_ptr.vmem [resolvable:$true] %s197
          %203 = dma.hbm_to_vmem [thread:$0]  %s1, 1024, %s198, [#allocation6], 64, 64, 4
        $region16: #{tpu_custom_call.1} parent=11 // pred_fallthru
          _
        // Predicated region
        $region17: #{tpu_custom_call.1} parent=11 // pred_check
          %p204 = pneg %p87
        $region18: #{tpu_custom_call.1} parent=11 // pred_check_branch
          %206 = sbr.rel (%p204) target = $region20
        $region19: #{tpu_custom_call.1} parent=11 // pred_region
          _
        $region20: #{tpu_custom_call.1} parent=11 // pred_fallthru
          _
        // Predicated region
        $region21: #{tpu_custom_call.1} parent=11 // pred_check
          %p207 = pneg %p108
        $region22: #{tpu_custom_call.1} parent=11 // pred_check_branch
          %209 = sbr.rel (%p207) target = $region24
        $region23: #{tpu_custom_call.1} parent=11 // pred_region
          _
        $region24: #{tpu_custom_call.1} parent=11 // pred_fallthru
          _
        // Predicated region
        $region25: #{tpu_custom_call.1} parent=11 // pred_check
          %p210 = pneg %p129
        $region26: #{tpu_custom_call.1} parent=11 // pred_check_branch
          %212 = sbr.rel (%p210) target = $region28
        $region27: #{tpu_custom_call.1} parent=11 // pred_region
          %s214 = ssub.s32 1024, 1024
          %215 = vsyncadd [#allocation6], %s214
          %s216 = sshll.u32 [#allocation7], 4
          %s217 = int_to_ptr.vmem [resolvable:$true] %s216
          %222 = dma.hbm_to_vmem [thread:$0]  %s4, 1024, %s217, [#allocation6], 64, 64, 4
        $region28: #{tpu_custom_call.1} parent=11 // pred_fallthru
          _
        // Predicated region
        $region29: #{tpu_custom_call.1} parent=11 // pred_check
          %p223 = pneg %p150
        $region30: #{tpu_custom_call.1} parent=11 // pred_check_branch
          %225 = sbr.rel (%p223) target = $region32
        $region31: #{tpu_custom_call.1} parent=11 // pred_region
          _
        $region32: #{tpu_custom_call.1} parent=11 // pred_fallthru
          _
      $region12: #{tpu_custom_call.1} parent=5 // pred_fallthru
        _
      %p226 = scmp.lt.s32.totalorder %s19, 2
      // Predicated region
      $region33: #{tpu_custom_call.1} parent=5 // pred_check
        %p227 = pneg %p226
      $region34: #{tpu_custom_call.1} parent=5 // pred_check_branch
        %229 = sbr.rel (%p227) target = $region36
      $region35: #{tpu_custom_call.1} parent=5 // pred_region
        // Predicated region
        $region37: #{tpu_custom_call.1} parent=35 // pred_check
          %p230 = pneg %p39
        $region38: #{tpu_custom_call.1} parent=35 // pred_check_branch
          %232 = sbr.rel (%p230) target = $region40
        $region39: #{tpu_custom_call.1} parent=35 // pred_region
          %s233 = sand.u32 %s29, 1
          %s234 = scalar_lea.sflag [#allocation3], %s233
          %s235 = sand.u32 %s29, 1
          %s236 = smul.addr %s235, 128
          %s237 = scalar_lea.vmem [#allocation2], %s236
          %s238 = smul.u32 32, %s19
          %s240 = ssub.s32 2048, 2048
          %241 = vsyncadd %s234, %s240
          %s242 = smul.addr %s238, 64
          %s243 = scalar_lea.hbm %s0, %s242
          %s244 = sshll.u32 %s237, 4
          %s245 = int_to_ptr.vmem [resolvable:$true] %s244
          %250 = dma.hbm_to_vmem [thread:$0]  %s243, 2048, %s245, %s234, 64, 64, 4
        $region40: #{tpu_custom_call.1} parent=35 // pred_fallthru
          _
      $region36: #{tpu_custom_call.1} parent=5 // pred_fallthru
        _
      %p251 = scmp.le.s32.totalorder 1, %s19
      %p252 = scmp.lt.s32.totalorder %s19, 3
      %p253 = pnand %p251, %p252
      %p254 = pneg %p253
      // Predicated region
      $region41: #{tpu_custom_call.1} parent=5 // pred_check
        _
      $region42: #{tpu_custom_call.1} parent=5 // pred_check_branch
        %256 = sbr.rel (%p253) target = $region44
      $region43: #{tpu_custom_call.1} parent=5 // pred_region
        %s257 = ssub.s32 %s19, 1
        %s258 = sand.u32 %s32, 1
        %s259 = scalar_lea.sflag [#allocation3], %s258
        %s260 = sand.u32 %s32, 1
        %s261 = smul.addr %s260, 128
        %s262 = scalar_lea.vmem [#allocation2], %s261
        // Predicated region
        $region45: #{tpu_custom_call.1} parent=43 // pred_check
          %p263 = pneg %p45
        $region46: #{tpu_custom_call.1} parent=43 // pred_check_branch
          %265 = sbr.rel (%p263) target = $region48
        $region47: #{tpu_custom_call.1} parent=43 // pred_region
          %266 = dma.done %s259, 2048
        $region48: #{tpu_custom_call.1} parent=43 // pred_fallthru
          _
        // Predicated region
        $region49: #{tpu_custom_call.1} parent=43 // pred_check
          %p267 = pneg %p66
        $region50: #{tpu_custom_call.1} parent=43 // pred_check_branch
          %269 = sbr.rel (%p267) target = $region52
        $region51: #{tpu_custom_call.1} parent=43 // pred_region
          %270 = dma.done [#allocation6], 1024
        $region52: #{tpu_custom_call.1} parent=43 // pred_fallthru
          _
        // Predicated region
        $region53: #{tpu_custom_call.1} parent=43 // pred_check
          %p271 = pneg %p129
        $region54: #{tpu_custom_call.1} parent=43 // pred_check_branch
          %273 = sbr.rel (%p271) target = $region56
        $region55: #{tpu_custom_call.1} parent=43 // pred_region
          %274 = dma.done [#allocation6], 1024
        $region56: #{tpu_custom_call.1} parent=43 // pred_fallthru
          _
        %s275 = sand.u32 %s32, 1
        %s276 = scalar_lea.sflag [#allocation3], %s275
        %s277 = sand.u32 %s32, 1
        %s278 = smul.addr %s277, 128
        %s279 = scalar_lea.vmem [#allocation2], %s278
        %p280 = pneg %p45
        %p281 = pneg %p42
        %p282 = pneg %p66
        %p283 = pneg %p63
        %p284 = pneg %p87
        %p285 = pneg %p84
        %p286 = pneg %p108
        %p287 = pneg %p105
        %p288 = pneg %p129
        %p289 = pneg %p126
        %p290 = pneg %p150
        %p291 = pneg %p147
        %p292 = pneg %p176
        %p293 = pneg %p173
        %s294 = sand.u32 %s163, 1
        %s295 = scalar_lea.sflag [#allocation4], %s294
        %s296 = sand.u32 %s163, 1
        %s297 = scalar_lea.vmem [#allocation8], %s296
        %s298 = smul.u32 32, %s24
        %v300 = vld [vmem:[%s262] sm:$0xf]
        %v301 = vld [vmem:[%s262 + $0x4] sm:$0xf]
        %v302 = vld [vmem:[%s262 + $0x8] sm:$0xf]
        %v303 = vld [vmem:[%s262 + $0xc] sm:$0xf]
        %v304 = vld [vmem:[%s262 + $0x10] sm:$0xf]
        %v305 = vld [vmem:[%s262 + $0x14] sm:$0xf]
        %v306 = vld [vmem:[%s262 + $0x18] sm:$0xf]
        %v307 = vld [vmem:[%s262 + $0x1c] sm:$0xf]
        %v308 = vld [vmem:[%s262 + $0x20] sm:$0xf]
        %v309 = vld [vmem:[%s262 + $0x24] sm:$0xf]
        %v310 = vld [vmem:[%s262 + $0x28] sm:$0xf]
        %v311 = vld [vmem:[%s262 + $0x2c] sm:$0xf]
        %v312 = vld [vmem:[%s262 + $0x30] sm:$0xf]
        %v313 = vld [vmem:[%s262 + $0x34] sm:$0xf]
        %v314 = vld [vmem:[%s262 + $0x38] sm:$0xf]
        %v315 = vld [vmem:[%s262 + $0x3c] sm:$0xf]
        %v316 = vld [vmem:[%s262 + $0x40] sm:$0xf]
        %v317 = vld [vmem:[%s262 + $0x44] sm:$0xf]
        %v318 = vld [vmem:[%s262 + $0x48] sm:$0xf]
        %v319 = vld [vmem:[%s262 + $0x4c] sm:$0xf]
        %v320 = vld [vmem:[%s262 + $0x50] sm:$0xf]
        %v321 = vld [vmem:[%s262 + $0x54] sm:$0xf]
        %v322 = vld [vmem:[%s262 + $0x58] sm:$0xf]
        %v323 = vld [vmem:[%s262 + $0x5c] sm:$0xf]
        %v324 = vld [vmem:[%s262 + $0x60] sm:$0xf]
        %v325 = vld [vmem:[%s262 + $0x64] sm:$0xf]
        %v326 = vld [vmem:[%s262 + $0x68] sm:$0xf]
        %v327 = vld [vmem:[%s262 + $0x6c] sm:$0xf]
        %v328 = vld [vmem:[%s262 + $0x70] sm:$0xf]
        %v329 = vld [vmem:[%s262 + $0x74] sm:$0xf]
        %v330 = vld [vmem:[%s262 + $0x78] sm:$0xf]
        %v331 = vld [vmem:[%s262 + $0x7c] sm:$0xf]
        %v332 = vld [vmem:[#allocation5] sm:$0xf]
        %v333 = vld [vmem:[#allocation5 + $0x4] sm:$0xf]
        %v334 = vld [vmem:[#allocation5 + $0x8] sm:$0xf]
        %v335 = vld [vmem:[#allocation5 + $0xc] sm:$0xf]
        %v336 = vld [vmem:[#allocation5 + $0x10] sm:$0xf]
        %v337 = vld [vmem:[#allocation5 + $0x14] sm:$0xf]
        %v338 = vld [vmem:[#allocation5 + $0x18] sm:$0xf]
        %v339 = vld [vmem:[#allocation5 + $0x1c] sm:$0xf]
        %v340 = vld [vmem:[#allocation5 + $0x20] sm:$0xf]
        %v341 = vld [vmem:[#allocation5 + $0x24] sm:$0xf]
        %v342 = vld [vmem:[#allocation5 + $0x28] sm:$0xf]
        %v343 = vld [vmem:[#allocation5 + $0x2c] sm:$0xf]
        %v344 = vld [vmem:[#allocation5 + $0x30] sm:$0xf]
        %v345 = vld [vmem:[#allocation5 + $0x34] sm:$0xf]
        %v346 = vld [vmem:[#allocation5 + $0x38] sm:$0xf]
        %v347 = vld [vmem:[#allocation5 + $0x3c] sm:$0xf]
        %v348 = vld [vmem:[%s2] sm:$0x1]
        %v350 = vlaneseq
        %v351 = vshrl.u32 %v350, 7
        %v352 = vsub.s32 0, %v351
        %v353 = vrot.slane %v348, %v352
        %v387 = vunpack.c.l.b16 %v300
        %v388 = vunpack.c.l.b16 %v301
        %v389 = vunpack.c.l.b16 %v302
        %v390 = vunpack.c.l.b16 %v303
        %v391 = vunpack.c.l.b16 %v304
        %v392 = vunpack.c.l.b16 %v305
        %v393 = vunpack.c.l.b16 %v306
        %v394 = vunpack.c.l.b16 %v307
        %v395 = vunpack.c.l.b16 %v308
        %v396 = vunpack.c.l.b16 %v309
        %v397 = vunpack.c.l.b16 %v310
        %v398 = vunpack.c.l.b16 %v311
        %v399 = vunpack.c.l.b16 %v312
        %v400 = vunpack.c.l.b16 %v313
        %v401 = vunpack.c.l.b16 %v314
        %v402 = vunpack.c.l.b16 %v315
        %v403 = vunpack.c.l.b16 %v316
        %v404 = vunpack.c.l.b16 %v317
        %v405 = vunpack.c.l.b16 %v318
        %v406 = vunpack.c.l.b16 %v319
        %v407 = vunpack.c.l.b16 %v320
        %v408 = vunpack.c.l.b16 %v321
        %v409 = vunpack.c.l.b16 %v322
        %v410 = vunpack.c.l.b16 %v323
        %v411 = vunpack.c.l.b16 %v324
        %v412 = vunpack.c.l.b16 %v325
        %v413 = vunpack.c.l.b16 %v326
        %v414 = vunpack.c.l.b16 %v327
        %v415 = vunpack.c.l.b16 %v328
        %v416 = vunpack.c.l.b16 %v329
        %v417 = vunpack.c.l.b16 %v330
        %v418 = vunpack.c.l.b16 %v331
        %v419 = vpack.c.b16 %v388, %v387
        %v420 = vpack.c.b16 %v390, %v389
        %v421 = vpack.c.b16 %v392, %v391
        %v422 = vpack.c.b16 %v394, %v393
        %v423 = vpack.c.b16 %v396, %v395
        %v424 = vpack.c.b16 %v398, %v397
        %v425 = vpack.c.b16 %v400, %v399
        %v426 = vpack.c.b16 %v402, %v401
        %v427 = vpack.c.b16 %v404, %v403
        %v428 = vpack.c.b16 %v406, %v405
        %v429 = vpack.c.b16 %v408, %v407
        %v430 = vpack.c.b16 %v410, %v409
        %v431 = vpack.c.b16 %v412, %v411
        %v432 = vpack.c.b16 %v414, %v413
        %v433 = vpack.c.b16 %v416, %v415
        %v434 = vpack.c.b16 %v418, %v417
        %v467 = vunpack.c.l.b16 %v332
        %v468 = vunpack.c.l.b16 %v333
        %v469 = vunpack.c.l.b16 %v334
        %v470 = vunpack.c.l.b16 %v335
        %v471 = vunpack.c.l.b16 %v336
        %v472 = vunpack.c.l.b16 %v337
        %v473 = vunpack.c.l.b16 %v338
        %v474 = vunpack.c.l.b16 %v339
        %v475 = vunpack.c.l.b16 %v340
        %v476 = vunpack.c.l.b16 %v341
        %v477 = vunpack.c.l.b16 %v342
        %v478 = vunpack.c.l.b16 %v343
        %v479 = vunpack.c.l.b16 %v344
        %v480 = vunpack.c.l.b16 %v345
        %v481 = vunpack.c.l.b16 %v346
        %v482 = vunpack.c.l.b16 %v347
        %v483 = vpack.c.b16 %v468, %v467
        %v484 = vpack.c.b16 %v470, %v469
        %v485 = vpack.c.b16 %v472, %v471
        %v486 = vpack.c.b16 %v474, %v473
        %v487 = vpack.c.b16 %v476, %v475
        %v488 = vpack.c.b16 %v478, %v477
        %v489 = vpack.c.b16 %v480, %v479
        %v490 = vpack.c.b16 %v482, %v481
        %499 = vmatprep.subr.bf16.mxu0 0
        %500 = vmatpush1.bf16.msra.mxu0 %v483
        %501 = vmatprep.subr.bf16.mxu0 0
        %502 = vmatpush1.bf16.msra.mxu0 %v484
        %503 = vmatprep.subr.bf16.mxu0 0
        %504 = vmatpush1.bf16.msra.mxu0 %v485
        %505 = vmatprep.subr.bf16.mxu0 0
        %506 = vmatpush1.bf16.msra.mxu0 %v486
        %507 = vmatprep.subr.bf16.mxu0 0
        %508 = vmatpush1.bf16.msra.mxu0 %v487
        %509 = vmatprep.subr.bf16.mxu0 0
        %510 = vmatpush1.bf16.msra.mxu0 %v488
        %511 = vmatprep.subr.bf16.mxu0 0
        %512 = vmatpush1.bf16.msra.mxu0 %v489
        %513 = vmatprep.subr.bf16.mxu0 0
        %514 = vmatpush1.bf16.msra.mxu0 %v490
        %515 = vmatprep.subr.bf16.mxu0 0
        %516 = vmatpush1.bf16.msra.mxu0 0
        %517 = vmatprep.subr.bf16.mxu0 0
        %518 = vmatpush1.bf16.msra.mxu0 0
        %519 = vmatprep.subr.bf16.mxu0 0
        %520 = vmatpush1.bf16.msra.mxu0 0
        %521 = vmatprep.subr.bf16.mxu0 0
        %522 = vmatpush1.bf16.msra.mxu0 0
        %523 = vmatprep.subr.bf16.mxu0 0
        %524 = vmatpush1.bf16.msra.mxu0 0
        %525 = vmatprep.subr.bf16.mxu0 0
        %526 = vmatpush1.bf16.msra.mxu0 0
        %527 = vmatprep.subr.bf16.mxu0 0
        %528 = vmatpush1.bf16.msra.mxu0 0
        %529 = vmatprep.subr.bf16.mxu0 0
        %530 = vmatpush1.bf16.msra.mxu0 0
        %531 = vmatprep.mubr.bf16.mxu0 0
        %532 = vmatmul.mubr.bf16.gmra.mrb[0].mxu0 %v419
        %v533 = vpop.f32.mrb[0].mxu0
        %v534 = vadd.f32 %v353, %v533
        %v535 = vpop.f32.mrb[0].mxu0
        %v536 = vpop.f32.mrb[0].mxu0
        %v537 = vadd.f32 %v353, %v536
        %v538 = vpop.f32.mrb[0].mxu0
        %539 = vmatprep.mubr.bf16.mxu0 0
        %540 = vmatmul.mubr.bf16.gmra.mrb[0].mxu0 %v420
        %v541 = vpop.f32.mrb[0].mxu0
        %v542 = vadd.f32 %v353, %v541
        %v543 = vpop.f32.mrb[0].mxu0
        %v544 = vpop.f32.mrb[0].mxu0
        %v545 = vadd.f32 %v353, %v544
        %v546 = vpop.f32.mrb[0].mxu0
        %547 = vmatprep.mubr.bf16.mxu0 0
        %548 = vmatmul.mubr.bf16.gmra.mrb[0].mxu0 %v421
        %v549 = vpop.f32.mrb[0].mxu0
        %v550 = vadd.f32 %v353, %v549
        %v551 = vpop.f32.mrb[0].mxu0
        %v552 = vpop.f32.mrb[0].mxu0
        %v553 = vadd.f32 %v353, %v552
        %v554 = vpop.f32.mrb[0].mxu0
        %555 = vmatprep.mubr.bf16.mxu0 0
        %556 = vmatmul.mubr.bf16.gmra.mrb[0].mxu0 %v422
        %v557 = vpop.f32.mrb[0].mxu0
        %v558 = vadd.f32 %v353, %v557
        %v559 = vpop.f32.mrb[0].mxu0
        %v560 = vpop.f32.mrb[0].mxu0
        %v561 = vadd.f32 %v353, %v560
        %v562 = vpop.f32.mrb[0].mxu0
        %563 = vmatprep.mubr.bf16.mxu0 0
        %564 = vmatmul.mubr.bf16.gmra.mrb[0].mxu0 %v423
        %v565 = vpop.f32.mrb[0].mxu0
        %v566 = vadd.f32 %v353, %v565
        %v567 = vpop.f32.mrb[0].mxu0
        %v568 = vpop.f32.mrb[0].mxu0
        %v569 = vadd.f32 %v353, %v568
        %v570 = vpop.f32.mrb[0].mxu0
        %571 = vmatprep.mubr.bf16.mxu0 0
        %572 = vmatmul.mubr.bf16.gmra.mrb[0].mxu0 %v424
        %v573 = vpop.f32.mrb[0].mxu0
        %v574 = vadd.f32 %v353, %v573
        %v575 = vpop.f32.mrb[0].mxu0
        %v576 = vpop.f32.mrb[0].mxu0
        %v577 = vadd.f32 %v353, %v576
        %v578 = vpop.f32.mrb[0].mxu0
        %579 = vmatprep.mubr.bf16.mxu0 0
        %580 = vmatmul.mubr.bf16.gmra.mrb[0].mxu0 %v425
        %v581 = vpop.f32.mrb[0].mxu0
        %v582 = vadd.f32 %v353, %v581
        %v583 = vpop.f32.mrb[0].mxu0
        %v584 = vpop.f32.mrb[0].mxu0
        %v585 = vadd.f32 %v353, %v584
        %v586 = vpop.f32.mrb[0].mxu0
        %587 = vmatprep.mubr.bf16.mxu0 0
        %588 = vmatmul.mubr.bf16.gmra.mrb[0].mxu0 %v426
        %v589 = vpop.f32.mrb[0].mxu0
        %v590 = vadd.f32 %v353, %v589
        %v591 = vpop.f32.mrb[0].mxu0
        %v592 = vpop.f32.mrb[0].mxu0
        %v593 = vadd.f32 %v353, %v592
        %v594 = vpop.f32.mrb[0].mxu0
        %595 = vmatprep.mubr.bf16.mxu0 0
        %596 = vmatmul.mubr.bf16.gmra.mrb[0].mxu0 %v427
        %v597 = vpop.f32.mrb[0].mxu0
        %v598 = vadd.f32 %v353, %v597
        %v599 = vpop.f32.mrb[0].mxu0
        %v600 = vpop.f32.mrb[0].mxu0
        %v601 = vadd.f32 %v353, %v600
        %v602 = vpop.f32.mrb[0].mxu0
        %603 = vmatprep.mubr.bf16.mxu0 0
        %604 = vmatmul.mubr.bf16.gmra.mrb[0].mxu0 %v428
        %v605 = vpop.f32.mrb[0].mxu0
        %v606 = vadd.f32 %v353, %v605
        %v607 = vpop.f32.mrb[0].mxu0
        %v608 = vpop.f32.mrb[0].mxu0
        %v609 = vadd.f32 %v353, %v608
        %v610 = vpop.f32.mrb[0].mxu0
        %611 = vmatprep.mubr.bf16.mxu0 0
        %612 = vmatmul.mubr.bf16.gmra.mrb[0].mxu0 %v429
        %v613 = vpop.f32.mrb[0].mxu0
        %v614 = vadd.f32 %v353, %v613
        %v615 = vpop.f32.mrb[0].mxu0
        %v616 = vpop.f32.mrb[0].mxu0
        %v617 = vadd.f32 %v353, %v616
        %v618 = vpop.f32.mrb[0].mxu0
        %619 = vmatprep.mubr.bf16.mxu0 0
        %620 = vmatmul.mubr.bf16.gmra.mrb[0].mxu0 %v430
        %v621 = vpop.f32.mrb[0].mxu0
        %v622 = vadd.f32 %v353, %v621
        %v623 = vpop.f32.mrb[0].mxu0
        %v624 = vpop.f32.mrb[0].mxu0
        %v625 = vadd.f32 %v353, %v624
        %v626 = vpop.f32.mrb[0].mxu0
        %627 = vmatprep.mubr.bf16.mxu0 0
        %628 = vmatmul.mubr.bf16.gmra.mrb[0].mxu0 %v431
        %v629 = vpop.f32.mrb[0].mxu0
        %v630 = vadd.f32 %v353, %v629
        %v631 = vpop.f32.mrb[0].mxu0
        %v632 = vpop.f32.mrb[0].mxu0
        %v633 = vadd.f32 %v353, %v632
        %v634 = vpop.f32.mrb[0].mxu0
        %635 = vmatprep.mubr.bf16.mxu0 0
        %636 = vmatmul.mubr.bf16.gmra.mrb[0].mxu0 %v432
        %v637 = vpop.f32.mrb[0].mxu0
        %v638 = vadd.f32 %v353, %v637
        %v639 = vpop.f32.mrb[0].mxu0
        %v640 = vpop.f32.mrb[0].mxu0
        %v641 = vadd.f32 %v353, %v640
        %v642 = vpop.f32.mrb[0].mxu0
        %643 = vmatprep.mubr.bf16.mxu0 0
        %644 = vmatmul.mubr.bf16.gmra.mrb[0].mxu0 %v433
        %v645 = vpop.f32.mrb[0].mxu0
        %v646 = vadd.f32 %v353, %v645
        %v647 = vpop.f32.mrb[0].mxu0
        %v648 = vpop.f32.mrb[0].mxu0
        %v649 = vadd.f32 %v353, %v648
        %v650 = vpop.f32.mrb[0].mxu0
        %651 = vmatprep.mubr.bf16.mxu0 0
        %652 = vmatmul.mubr.bf16.gmra.mrb[0].mxu0 %v434
        %v653 = vpop.f32.mrb[0].mxu0
        %v654 = vadd.f32 %v353, %v653
        %v655 = vpop.f32.mrb[0].mxu0
        %v656 = vpop.f32.mrb[0].mxu0
        %v657 = vadd.f32 %v353, %v656
        %v658 = vpop.f32.mrb[0].mxu0
        %659 = vdwg.mxu0
        %v660 = vmax.f32 %v534, 0.0
        %v661 = vmax.f32 %v537, 0.0
        %v662 = vmax.f32 %v542, 0.0
        %v663 = vmax.f32 %v545, 0.0
        %v664 = vmax.f32 %v550, 0.0
        %v665 = vmax.f32 %v553, 0.0
        %v666 = vmax.f32 %v558, 0.0
        %v667 = vmax.f32 %v561, 0.0
        %v668 = vmax.f32 %v566, 0.0
        %v669 = vmax.f32 %v569, 0.0
        %v670 = vmax.f32 %v574, 0.0
        %v671 = vmax.f32 %v577, 0.0
        %v672 = vmax.f32 %v582, 0.0
        %v673 = vmax.f32 %v585, 0.0
        %v674 = vmax.f32 %v590, 0.0
        %v675 = vmax.f32 %v593, 0.0
        %v676 = vmax.f32 %v598, 0.0
        %v677 = vmax.f32 %v601, 0.0
        %v678 = vmax.f32 %v606, 0.0
        %v679 = vmax.f32 %v609, 0.0
        %v680 = vmax.f32 %v614, 0.0
        %v681 = vmax.f32 %v617, 0.0
        %v682 = vmax.f32 %v622, 0.0
        %v683 = vmax.f32 %v625, 0.0
        %v684 = vmax.f32 %v630, 0.0
        %v685 = vmax.f32 %v633, 0.0
        %v686 = vmax.f32 %v638, 0.0
        %v687 = vmax.f32 %v641, 0.0
        %v688 = vmax.f32 %v646, 0.0
        %v689 = vmax.f32 %v649, 0.0
        %v690 = vmax.f32 %v654, 0.0
        %v691 = vmax.f32 %v657, 0.0
        %v692 = vld [vmem:[%s3] sm:$0x3]
        %v693 = vpack.c.bf16 %v661, %v660
        %v694 = vpack.c.bf16 %v663, %v662
        %v695 = vpack.c.bf16 %v665, %v664
        %v696 = vpack.c.bf16 %v667, %v666
        %v697 = vpack.c.bf16 %v669, %v668
        %v698 = vpack.c.bf16 %v671, %v670
        %v699 = vpack.c.bf16 %v673, %v672
        %v700 = vpack.c.bf16 %v675, %v674
        %v701 = vpack.c.bf16 %v677, %v676
        %v702 = vpack.c.bf16 %v679, %v678
        %v703 = vpack.c.bf16 %v681, %v680
        %v704 = vpack.c.bf16 %v683, %v682
        %v705 = vpack.c.bf16 %v685, %v684
        %v706 = vpack.c.bf16 %v687, %v686
        %v707 = vpack.c.bf16 %v689, %v688
        %v708 = vpack.c.bf16 %v691, %v690
        %v711 = vunpack.c.l.s4 1966171168
        %v712 = vunpack.c.0.s8 %v711
        %v713 = vlaneseq
        %v714 = vshrl.u32 %v713, 7
        %v715 = vsub.s32 %v712, %v714
        %v716 = vrot.slane %v692, %v715
        %v717 = vcombine.high %v716, %v716
        %v719 = vunpack.c.l.s4 1966171168
        %v720 = vunpack.c.0.s8 %v719
        %v721 = vlaneseq
        %v722 = vshrl.u32 %v721, 7
        %v723 = vsub.s32 %v720, %v722
        %v724 = vrot.slane %v716, %v723
        %v726 = vunpack.c.l.s4 1966171168
        %v727 = vunpack.c.0.s8 %v726
        %v728 = vlaneseq
        %v729 = vshrl.u32 %v728, 7
        %v730 = vsub.s32 %v727, %v729
        %v731 = vrot.slane %v717, %v730
        %734 = vmatprep.subr.bf16.mxu0 0
        %735 = vmatpush1.bf16.msra.mxu0 %v693
        %736 = vmatprep.subr.bf16.mxu0 0
        %737 = vmatpush1.bf16.msra.mxu0 %v694
        %738 = vmatprep.subr.bf16.mxu0 0
        %739 = vmatpush1.bf16.msra.mxu0 %v695
        %740 = vmatprep.subr.bf16.mxu0 0
        %741 = vmatpush1.bf16.msra.mxu0 %v696
        %742 = vmatprep.subr.bf16.mxu0 0
        %743 = vmatpush1.bf16.msra.mxu0 %v697
        %744 = vmatprep.subr.bf16.mxu0 0
        %745 = vmatpush1.bf16.msra.mxu0 %v698
        %746 = vmatprep.subr.bf16.mxu0 0
        %747 = vmatpush1.bf16.msra.mxu0 %v699
        %748 = vmatprep.subr.bf16.mxu0 0
        %749 = vmatpush1.bf16.msra.mxu0 %v700
        %750 = vmatprep.subr.bf16.mxu0 0
        %751 = vmatpush1.bf16.msra.mxu0 %v701
        %752 = vmatprep.subr.bf16.mxu0 0
        %753 = vmatpush1.bf16.msra.mxu0 %v702
        %754 = vmatprep.subr.bf16.mxu0 0
        %755 = vmatpush1.bf16.msra.mxu0 %v703
        %756 = vmatprep.subr.bf16.mxu0 0
        %757 = vmatpush1.bf16.msra.mxu0 %v704
        %758 = vmatprep.subr.bf16.mxu0 0
        %759 = vmatpush1.bf16.msra.mxu0 %v705
        %760 = vmatprep.subr.bf16.mxu0 0
        %761 = vmatpush1.bf16.msra.mxu0 %v706
        %762 = vmatprep.subr.bf16.mxu0 0
        %763 = vmatpush1.bf16.msra.mxu0 %v707
        %764 = vmatprep.subr.bf16.mxu0 0
        %765 = vmatpush1.bf16.msra.mxu0 %v708
        %766 = vmatprep.mubr.bf16.mxu0 %v731
        %767 = vmatmul.mubr.bf16.gmra.mrb[0].mxu0 %v724
        %v768 = vpop.f32.mrb[0].mxu0
        %v769 = vadd.f32 0.0, %v768
        %v770 = vpop.f32.mrb[0].mxu0
        %v771 = vpop.f32.mrb[0].mxu0
        %v772 = vpop.f32.mrb[0].mxu0
        %773 = vdwg.mxu0
        %v774 = vmul.f32 %v769, 0.00390625
        %v775 = vpack.c.bf16 %v774, %v774
        %v776 = vld [vmem:[#allocation7] sm:$0xf]
        %v777 = vld [vmem:[#allocation7 + $0x4] sm:$0xf]
        %v778 = vld [vmem:[#allocation7 + $0x8] sm:$0xf]
        %v779 = vld [vmem:[#allocation7 + $0xc] sm:$0xf]
        %v780 = vld [vmem:[#allocation7 + $0x10] sm:$0xf]
        %v781 = vld [vmem:[#allocation7 + $0x14] sm:$0xf]
        %v782 = vld [vmem:[#allocation7 + $0x18] sm:$0xf]
        %v783 = vld [vmem:[#allocation7 + $0x1c] sm:$0xf]
        %v784 = vld [vmem:[#allocation7 + $0x20] sm:$0xf]
        %v785 = vld [vmem:[#allocation7 + $0x24] sm:$0xf]
        %v786 = vld [vmem:[#allocation7 + $0x28] sm:$0xf]
        %v787 = vld [vmem:[#allocation7 + $0x2c] sm:$0xf]
        %v788 = vld [vmem:[#allocation7 + $0x30] sm:$0xf]
        %v789 = vld [vmem:[#allocation7 + $0x34] sm:$0xf]
        %v790 = vld [vmem:[#allocation7 + $0x38] sm:$0xf]
        %v791 = vld [vmem:[#allocation7 + $0x3c] sm:$0xf]
        %v792 = vld [vmem:[%s5] sm:$0x1]
        %v809 = vunpack.c.l.b16 %v776
        %v810 = vunpack.c.l.b16 %v777
        %v811 = vunpack.c.l.b16 %v778
        %v812 = vunpack.c.l.b16 %v779
        %v813 = vunpack.c.l.b16 %v780
        %v814 = vunpack.c.l.b16 %v781
        %v815 = vunpack.c.l.b16 %v782
        %v816 = vunpack.c.l.b16 %v783
        %v817 = vunpack.c.l.b16 %v784
        %v818 = vunpack.c.l.b16 %v785
        %v819 = vunpack.c.l.b16 %v786
        %v820 = vunpack.c.l.b16 %v787
        %v821 = vunpack.c.l.b16 %v788
        %v822 = vunpack.c.l.b16 %v789
        %v823 = vunpack.c.l.b16 %v790
        %v824 = vunpack.c.l.b16 %v791
        %v825 = vpack.c.b16 %v810, %v809
        %v826 = vpack.c.b16 %v812, %v811
        %v827 = vpack.c.b16 %v814, %v813
        %v828 = vpack.c.b16 %v816, %v815
        %v829 = vpack.c.b16 %v818, %v817
        %v830 = vpack.c.b16 %v820, %v819
        %v831 = vpack.c.b16 %v822, %v821
        %v832 = vpack.c.b16 %v824, %v823
        %841 = vmatprep.subr.bf16.mxu0 0
        %842 = vmatpush1.bf16.msra.mxu0 %v825
        %843 = vmatprep.subr.bf16.mxu0 0
        %844 = vmatpush1.bf16.msra.mxu0 %v826
        %845 = vmatprep.subr.bf16.mxu0 0
        %846 = vmatpush1.bf16.msra.mxu0 %v827
        %847 = vmatprep.subr.bf16.mxu0 0
        %848 = vmatpush1.bf16.msra.mxu0 %v828
        %849 = vmatprep.subr.bf16.mxu0 0
        %850 = vmatpush1.bf16.msra.mxu0 %v829
        %851 = vmatprep.subr.bf16.mxu0 0
        %852 = vmatpush1.bf16.msra.mxu0 %v830
        %853 = vmatprep.subr.bf16.mxu0 0
        %854 = vmatpush1.bf16.msra.mxu0 %v831
        %855 = vmatprep.subr.bf16.mxu0 0
        %856 = vmatpush1.bf16.msra.mxu0 %v832
        %857 = vmatprep.subr.bf16.mxu0 0
        %858 = vmatpush1.bf16.msra.mxu0 0
        %859 = vmatprep.subr.bf16.mxu0 0
        %860 = vmatpush1.bf16.msra.mxu0 0
        %861 = vmatprep.subr.bf16.mxu0 0
        %862 = vmatpush1.bf16.msra.mxu0 0
        %863 = vmatprep.subr.bf16.mxu0 0
        %864 = vmatpush1.bf16.msra.mxu0 0
        %865 = vmatprep.subr.bf16.mxu0 0
        %866 = vmatpush1.bf16.msra.mxu0 0
        %867 = vmatprep.subr.bf16.mxu0 0
        %868 = vmatpush1.bf16.msra.mxu0 0
        %869 = vmatprep.subr.bf16.mxu0 0
        %870 = vmatpush1.bf16.msra.mxu0 0
        %871 = vmatprep.subr.bf16.mxu0 0
        %872 = vmatpush1.bf16.msra.mxu0 0
        %873 = vmatprep.mubr.bf16.mxu0 0
        %874 = vmatmul.mubr.bf16.gmra.mrb[0].mxu0 %v775
        %v875 = vpop.f32.mrb[0].mxu0
        %v876 = vadd.f32 %v792, %v875
        %v877 = vpop.f32.mrb[0].mxu0
        %v878 = vpop.f32.mrb[0].mxu0
        %v879 = vpop.f32.mrb[0].mxu0
        %880 = vdwg.mxu0
        %881 = vst [vmem:[%s297] sm:$0x1] %v876
        %s882 = sand.u32 %s163, 1
        %s883 = scalar_lea.sflag [#allocation4], %s882
        %s884 = sand.u32 %s163, 1
        %s885 = scalar_lea.vmem [#allocation8], %s884
        // Predicated region
        $region57: #{tpu_custom_call.1} parent=43 // pred_check
          %p886 = pneg %p173
        $region58: #{tpu_custom_call.1} parent=43 // pred_check_branch
          %888 = sbr.rel (%p886) target = $region60
        $region59: #{tpu_custom_call.1} parent=43 // pred_region
          %s890 = ssub.s32 16, 16
          %891 = vsyncadd %s883, %s890
          %s892 = smul.addr %s24, 16
          %s893 = scalar_lea.hbm %s6, %s892
          %s895 = sshll.u32 %s885, 4
          %s896 = int_to_ptr.vmem [resolvable:$true] %s895
          %898 = dma.vmem_to_hbm [thread:$0]  %s896, 16, %s893, %s883
        $region60: #{tpu_custom_call.1} parent=43 // pred_fallthru
          _
      $region44: #{tpu_custom_call.1} parent=5 // pred_fallthru
        _
      %p899 = scmp.le.s32.totalorder 2, %s19
      // Predicated region
      $region61: #{tpu_custom_call.1} parent=5 // pred_check
        %p900 = pneg %p899
      $region62: #{tpu_custom_call.1} parent=5 // pred_check_branch
        %902 = sbr.rel (%p900) target = $region64
      $region63: #{tpu_custom_call.1} parent=5 // pred_region
        %s903 = ssub.s32 %s19, 2
        // Predicated region
        $region65: #{tpu_custom_call.1} parent=63 // pred_check
          %p904 = pneg %p179
        $region66: #{tpu_custom_call.1} parent=63 // pred_check_branch
          %906 = sbr.rel (%p904) target = $region68
        $region67: #{tpu_custom_call.1} parent=63 // pred_region
          %s907 = sand.u32 %s164, 1
          %s908 = scalar_lea.sflag [#allocation4], %s907
          %s909 = sand.u32 %s164, 1
          %s910 = scalar_lea.vmem [#allocation8], %s909
          %911 = dma.done %s908, 16
        $region68: #{tpu_custom_call.1} parent=63 // pred_fallthru
          _
      $region64: #{tpu_custom_call.1} parent=5 // pred_fallthru
        _
    $region6: #{tpu_custom_call.1} parent=1 // loop_footer
      %s23 = sadd.s32 1, %s19
    $region7: #{tpu_custom_call.1} parent=1 // loop_footer_branch
      %18 = sbr.rel target = $region3
    $region8: #{tpu_custom_call.1} parent=1 // loop_exit
      _
    %912 = vsyncpa [#allocation3], 1
    %s913 = scalar_lea.sflag [#allocation3], 1
    %914 = vsyncpa %s913, 1
    %915 = vsyncpa [#allocation6], 1
    %916 = vsyncpa [#allocation4], 1
    %s917 = scalar_lea.sflag [#allocation4], 1
    %918 = vsyncpa %s917, 1

</llo_original>
